<compile_context>
chip_gen: v5e
topology: v5e:2x2
jax: 0.10.0
libtpu: 0.0.40
codegen_flags: <defaults>
</compile_context>

<pallas_src>
import functools

import jax
import jax.numpy as jnp
from jax.experimental import pallas as pl
from jax.experimental.pallas import tpu as pltpu


def binary_model_kernel(x_ref, wt_ref, b_ref, chv_ref, o_ref):
    # rp_layer: bf16 x (TILE_N, dim) @ bf16 W_t (dim, D), f32 accumulate, + f32 bias (1, D)
    z = jnp.dot(x_ref[...], wt_ref[...], preferred_element_type=jnp.float32) + b_ref[...]
    # soft binarization in f32: clamp to [-1, 1], then z * (2 - |z|)
    #   [-1, 0): 2z + z^2 ; [0, 1): 2z - z^2 ; endpoints map to +/-1 — all equal z*(2-|z|).
    z = jnp.clip(z, -1.0, 1.0)
    enc = z * (2.0 - jnp.abs(z))
    # similarity: enc (TILE_N, D) @ chv_scaled_t (D, C); hard binarization of class_hvs and
    # the 1/D scale are folded into chv_scaled_t by the wrapper. bf16 operands, f32 result.
    o_ref[...] = jnp.dot(
        enc.astype(jnp.bfloat16), chv_ref[...], preferred_element_type=jnp.float32
    )


def _round_up(a, m):
    return ((a + m - 1) // m) * m


@functools.partial(jax.jit, static_argnames=("tile_n",))
def binary_model_forward(x, w, b, class_hvs, *, tile_n=512):
    """x: (N, dim) f32; w: (D, dim) f32 (torch Linear weight); b: (D,); class_hvs: (C, D)."""
    n, dim = x.shape
    d_hv = w.shape[0]
    c = class_hvs.shape[0]

    # Constant-across-calls preprocessing hoisted out of the kernel.
    x_bf = x.astype(jnp.bfloat16)                       # (N, dim)
    w_t = w.T.astype(jnp.bfloat16)                      # (dim, D)
    b2d = b.reshape(1, d_hv).astype(jnp.float32)        # (1, D) — bias added in f32
    # hard binarize (+1/-1), fold 1/D similarity scale, pre-transpose -> (D, C).
    # values are exactly +/-2^-9, so the bf16 cast is lossless.
    chv_scaled_t = (
        jnp.where(class_hvs >= 0.0, 1.0, -1.0) * (1.0 / d_hv)
    ).T.astype(jnp.bfloat16)

    # Adaptive batch tile (shapes are static under jit). Always a multiple of 8 (sublane).
    tile = max(8, min(tile_n, _round_up(n, 8)))
    # Ensure >=2 grid steps when there is enough work, so the "parallel" batch axis can
    # shard across v7x's two TensorCores.
    if pl.cdiv(n, tile) < 2 and n >= 256:
        tile = max(8, _round_up(pl.cdiv(n, 2), 8))
    n_steps = pl.cdiv(n, tile)  # ragged last block if tile does not divide N

    out = pl.pallas_call(
        binary_model_kernel,
        out_shape=jax.ShapeDtypeStruct((n, c), jnp.float32),
        grid_spec=pltpu.PrefetchScalarGridSpec(
            num_scalar_prefetch=0,
            grid=(n_steps,),
            in_specs=[
                pl.BlockSpec((tile, dim), lambda i: (i, 0)),   # x: tiled over batch
                pl.BlockSpec((dim, d_hv), lambda i: (0, 0)),   # W_t: VMEM-resident
                pl.BlockSpec((1, d_hv), lambda i: (0, 0)),     # bias: VMEM-resident
                pl.BlockSpec((d_hv, c), lambda i: (0, 0)),     # class HVs: VMEM-resident
            ],
            out_specs=pl.BlockSpec((tile, c), lambda i: (i, 0)),
        ),
        compiler_params=pltpu.CompilerParams(
            dimension_semantics=("parallel",),
        ),
    )(x_bf, w_t, b2d, chv_scaled_t)

    return out


def reference_forward(x, w, b, class_hvs):
    z = x @ w.T + b
    z = jnp.clip(z, -1.0, 1.0)
    enc = jnp.where(z < 0.0, 2.0 * z + z * z, 2.0 * z - z * z)
    chv = jnp.where(class_hvs >= 0.0, 1.0, -1.0)
    return enc @ chv.T / class_hvs.shape[1]


if __name__ == "__main__":
    # Small shapes consistent with the module: dim=32 input features, D=512 HV dim, 8 classes.
    N, DIM, D, C = 8, 32, 512, 8

    key = jax.random.PRNGKey(0)
    kx, kw, kb, kc = jax.random.split(key, 4)

    x = jax.random.normal(kx, (N, DIM), dtype=jnp.float32)
    # nn.Linear(dim, D): weight (D, dim), bias (D,). Deterministic synthetic init.
    w = jax.random.normal(kw, (D, DIM), dtype=jnp.float32) * 0.1
    b = jax.random.normal(kb, (D,), dtype=jnp.float32) * 0.1
    # class_hvs is a zeros buffer in __init__; initialized here with random values so
    # binarize_hard / similarity is exercised non-trivially.
    class_hvs = jax.random.normal(kc, (C, D), dtype=jnp.float32)

    out = binary_model_forward(x, w, b, class_hvs)
    out = jax.block_until_ready(out)

    ref = reference_forward(x, w, b, class_hvs)
    assert out.shape == (N, C)
    # bf16 matmul operands (f32 accumulation) vs. the pure-f32 reference: the similarity is
    # an average over D=512 terms, so ~1e-3 absolute error is expected; keep a safe margin.
    assert jnp.allclose(out, ref, atol=1.5e-2, rtol=1e-2), "kernel mismatch vs reference"

    print("KERNEL_OK")
</pallas_src>

<mosaic_0001>
module attributes {stable_mosaic.version = 11 : i64} {
  func.func @binary_model_kernel(%arg0: i32, %arg1: memref<8x32xbf16, #tpu.memory_space<vmem>>, %arg2: memref<32x512xbf16, #tpu.memory_space<vmem>>, %arg3: memref<1x512xf32, #tpu.memory_space<vmem>>, %arg4: memref<512x8xbf16, #tpu.memory_space<vmem>>, %arg5: memref<8x8xf32, #tpu.memory_space<vmem>>) attributes {dimension_semantics = [#tpu.dimension_semantics<parallel>], iteration_bounds = array<i64: 1>, scalar_prefetch = 0 : i64, scratch_operands = 0 : i64, tpu.core_type = #tpu.core_type<tc>, window_params = [{transform_indices = @transform_0, window_bounds = array<i64: 8, 32>}, {pipeline_mode = #tpu.pipeline_mode<synchronous>, transform_indices = @transform_1, window_bounds = array<i64: 32, 512>}, {pipeline_mode = #tpu.pipeline_mode<synchronous>, transform_indices = @transform_2, window_bounds = array<i64: 1, 512>}, {pipeline_mode = #tpu.pipeline_mode<synchronous>, transform_indices = @transform_3, window_bounds = array<i64: 512, 8>}, {transform_indices = @transform_4, window_bounds = array<i64: 8, 8>}]} {
    %c0 = arith.constant 0 : index
    %c0_0 = arith.constant 0 : index
    %0 = vector.load %arg1[%c0, %c0_0] : memref<8x32xbf16, #tpu.memory_space<vmem>>, vector<8x32xbf16>
    %c0_1 = arith.constant 0 : index
    %c0_2 = arith.constant 0 : index
    %1 = vector.load %arg2[%c0_1, %c0_2] : memref<32x512xbf16, #tpu.memory_space<vmem>>, vector<32x512xbf16>
    %cst = arith.constant dense<0.000000e+00> : vector<8x512xf32>
    %2 = tpu.matmul %0, %1, %cst {dimension_numbers = #tpu.dot_dimension_numbers<[1], [0], [0], [1], [0, 0, 1, 1], [], []>} : vector<8x32xbf16>, vector<32x512xbf16>, vector<8x512xf32> -> vector<8x512xf32>
    %c0_3 = arith.constant 0 : index
    %c0_4 = arith.constant 0 : index
    %3 = vector.load %arg3[%c0_3, %c0_4] : memref<1x512xf32, #tpu.memory_space<vmem>>, vector<1x512xf32>
    %4 = vector.broadcast %3 : vector<1x512xf32> to vector<8x512xf32>
    %5 = arith.addf %2, %4 : vector<8x512xf32>
    %cst_5 = arith.constant -1.000000e+00 : f32
    %cst_6 = arith.constant 1.000000e+00 : f32
    %6 = vector.broadcast %cst_5 : f32 to vector<8x512xf32>
    %7 = arith.maximumf %6, %5 : vector<8x512xf32>
    %8 = vector.broadcast %cst_6 : f32 to vector<8x512xf32>
    %9 = arith.minimumf %8, %7 : vector<8x512xf32>
    %10 = math.absf %9 : vector<8x512xf32>
    %cst_7 = arith.constant 2.000000e+00 : f32
    %11 = vector.broadcast %cst_7 : f32 to vector<8x512xf32>
    %12 = arith.subf %11, %10 : vector<8x512xf32>
    %13 = arith.mulf %9, %12 : vector<8x512xf32>
    %14 = arith.truncf %13 : vector<8x512xf32> to vector<8x512xbf16>
    %c0_8 = arith.constant 0 : index
    %c0_9 = arith.constant 0 : index
    %15 = vector.load %arg4[%c0_8, %c0_9] : memref<512x8xbf16, #tpu.memory_space<vmem>>, vector<512x8xbf16>
    %cst_10 = arith.constant dense<0.000000e+00> : vector<8x8xf32>
    %16 = tpu.matmul %14, %15, %cst_10 {dimension_numbers = #tpu.dot_dimension_numbers<[1], [0], [0], [1], [0, 0, 1, 1], [], []>} : vector<8x512xbf16>, vector<512x8xbf16>, vector<8x8xf32> -> vector<8x8xf32>
    %c0_11 = arith.constant 0 : index
    %c0_12 = arith.constant 0 : index
    %17 = vector.load %arg5[%c0_11, %c0_12] : memref<8x8xf32, #tpu.memory_space<vmem>>, vector<8x8xf32>
    tpu.vector_store %arg5[%c0_11, %c0_12], %16 {strides = array<i32>} : memref<8x8xf32, #tpu.memory_space<vmem>>, vector<8x8xf32>,
    return
  }
  func.func @transform_0(%arg0: i32) -> (i32, i32) {
    %c0_i32 = arith.constant 0 : i32
    %c0_i32_0 = arith.constant 0 : i32
    return %arg0, %c0_i32 : i32, i32
  }
  func.func @transform_1(%arg0: i32) -> (i32, i32) {
    %c0_i32 = arith.constant 0 : i32
    %c0_i32_0 = arith.constant 0 : i32
    %c0_i32_1 = arith.constant 0 : i32
    return %c0_i32, %c0_i32_0 : i32, i32
  }
  func.func @transform_2(%arg0: i32) -> (i32, i32) {
    %c0_i32 = arith.constant 0 : i32
    %c0_i32_0 = arith.constant 0 : i32
    %c0_i32_1 = arith.constant 0 : i32
    return %c0_i32, %c0_i32_0 : i32, i32
  }
  func.func @transform_3(%arg0: i32) -> (i32, i32) {
    %c0_i32 = arith.constant 0 : i32
    %c0_i32_0 = arith.constant 0 : i32
    %c0_i32_1 = arith.constant 0 : i32
    return %c0_i32, %c0_i32_0 : i32, i32
  }
  func.func @transform_4(%arg0: i32) -> (i32, i32) {
    %c0_i32 = arith.constant 0 : i32
    %c0_i32_0 = arith.constant 0 : i32
    return %arg0, %c0_i32 : i32, i32
  }
}

</mosaic_0001>

<llo_original>
// kernel: binary_model_forward.1
$region0: #{binary_model_forward.1}
  #allocation0 [shape = 'u32[]', space=smem, size = 0x4, offset = 0x4, fixed_abs, tag = 'smem constant byte address 0x4 - core index']
  #allocation1 [shape = 'u32[72,128]{1,0:T(1,128)}', space=vmem, size = 0x9000, scoped, tag = 'internal scratch']
  %s0 = inlined_call_operand.vmem [shape: bf16[8,32], index: 0, kind: input, shape index: {}]
  %s1 = inlined_call_operand.vmem [shape: bf16[32,512], index: 1, kind: input, shape index: {}]
  %s2 = inlined_call_operand.vmem [shape: f32[1,512], index: 2, kind: input, shape index: {}]
  %s3 = inlined_call_operand.vmem [shape: bf16[512,8], index: 3, kind: input, shape index: {}]
  %s4 = inlined_call_operand.hbm [shape: f32[8,8], index: 4, kind: output, shape index: {}]
  %s5 = sld [smem:[#allocation0]]
  $region26: #{binary_model_forward.1} parent=0
    _
  %s7 = ssub.s32 1, %s5
  %s8 = scalar_select 0, %s7, %s5
  $region1: #{binary_model_forward.1} parent=0
    #allocation2 [shape = 'u8[4096]{0}', space=vmem, size = 0x1000, scoped, tag = 'output window, operand 0, single buffered']
    #allocation3 [shape = 's32[1]{0}', space=sflag, size = 0x4, scoped, tag = 'scoped memory for binary_model_forward.1']
    %9 = vsyncpa [#allocation3], 0
    // Predicated region
    $region2: #{binary_model_forward.1} parent=1 // pred_check
      _
    $region3: #{binary_model_forward.1} parent=1 // pred_check_branch
      %11 = sbr.rel (0) target = $region5
    $region4: #{binary_model_forward.1} parent=1 // pred_region
      _
    $region5: #{binary_model_forward.1} parent=1 // pred_fallthru
      _
    // Predicated region
    $region6: #{binary_model_forward.1} parent=1 // pred_check
      _
    $region7: #{binary_model_forward.1} parent=1 // pred_check_branch
      %13 = sbr.rel (0) target = $region9
    $region8: #{binary_model_forward.1} parent=1 // pred_region
      _
    $region9: #{binary_model_forward.1} parent=1 // pred_fallthru
      _
    // Predicated region
    $region10: #{binary_model_forward.1} parent=1 // pred_check
      _
    $region11: #{binary_model_forward.1} parent=1 // pred_check_branch
      %15 = sbr.rel (0) target = $region13
    $region12: #{binary_model_forward.1} parent=1 // pred_region
      _
    $region13: #{binary_model_forward.1} parent=1 // pred_fallthru
      _
    // Predicated region
    $region14: #{binary_model_forward.1} parent=1 // pred_check
      _
    $region15: #{binary_model_forward.1} parent=1 // pred_check_branch
      %17 = sbr.rel (0) target = $region17
    $region16: #{binary_model_forward.1} parent=1 // pred_region
      _
    $region17: #{binary_model_forward.1} parent=1 // pred_fallthru
      _
    %v19 = vld [vmem:[%s0] sm:$0xf]
    %v20 = vld [vmem:[%s1] sm:$0xff]
    %v21 = vld [vmem:[%s1 + $0x8] sm:$0xff]
    %v22 = vld [vmem:[%s1 + $0x10] sm:$0xff]
    %v23 = vld [vmem:[%s1 + $0x18] sm:$0xff]
    %v24 = vld [vmem:[%s1 + $0x20] sm:$0xff]
    %v25 = vld [vmem:[%s1 + $0x28] sm:$0xff]
    %v26 = vld [vmem:[%s1 + $0x30] sm:$0xff]
    %v27 = vld [vmem:[%s1 + $0x38] sm:$0xff]
    %v28 = vld [vmem:[%s2] sm:$0xf]
    %v30 = vperm.slane %v28, 0
    %v31 = vperm.slane %v28, 1
    %v32 = vperm.slane %v28, 2
    %v33 = vperm.slane %v28, 3
    %v46 = vunpack.c.l.b16 %v20
    %v47 = vunpack.c.h.b16 %v20
    %v48 = vunpack.c.l.b16 %v21
    %v49 = vunpack.c.h.b16 %v21
    %v50 = vunpack.c.l.b16 %v22
    %v51 = vunpack.c.h.b16 %v22
    %v52 = vunpack.c.l.b16 %v23
    %v53 = vunpack.c.h.b16 %v23
    %v54 = vunpack.c.l.b16 %v24
    %v55 = vunpack.c.h.b16 %v24
    %v56 = vunpack.c.l.b16 %v25
    %v57 = vunpack.c.h.b16 %v25
    %v58 = vunpack.c.l.b16 %v26
    %v59 = vunpack.c.h.b16 %v26
    %v60 = vunpack.c.l.b16 %v27
    %v61 = vunpack.c.h.b16 %v27
    %v62 = vpack.c.b16 %v50, %v46
    %v63 = vpack.c.b16 %v51, %v47
    %v64 = vpack.c.b16 %v52, %v48
    %v65 = vpack.c.b16 %v53, %v49
    %v66 = vpack.c.b16 %v58, %v54
    %v67 = vpack.c.b16 %v59, %v55
    %v68 = vpack.c.b16 %v60, %v56
    %v69 = vpack.c.b16 %v61, %v57
    %vm78 = vcmask 261120
    %v80 = vsel %vm78, %v19, 0
    %82 = vmatpush.bf16.msra.mxu0 0
    %83 = vmatpush.bf16.msra.mxu0 0
    %84 = vmatpush.bf16.msra.mxu0 0
    %85 = vmatpush.bf16.msra.mxu0 0
    %86 = vmatpush.bf16.msra.mxu0 0
    %87 = vmatpush.bf16.msra.mxu0 0
    %88 = vmatpush.bf16.msra.mxu0 %v66
    %89 = vmatpush.bf16.msra.mxu0 %v62
    %90 = vmatmul.bf16.gmra.mxu0 %v80
    %v91 = vpop.f32.mrf.mxu0
    %v92 = vadd.f32 %v30, %v91
    %v93 = vpop.f32.mrf.mxu0
    %94 = vdwg.mxu0
    %95 = vmatpush.bf16.msra.mxu0 0
    %96 = vmatpush.bf16.msra.mxu0 0
    %97 = vmatpush.bf16.msra.mxu0 0
    %98 = vmatpush.bf16.msra.mxu0 0
    %99 = vmatpush.bf16.msra.mxu0 0
    %100 = vmatpush.bf16.msra.mxu0 0
    %101 = vmatpush.bf16.msra.mxu0 %v67
    %102 = vmatpush.bf16.msra.mxu0 %v63
    %103 = vmatmul.bf16.gmra.mxu0 %v80
    %v104 = vpop.f32.mrf.mxu0
    %v105 = vadd.f32 %v31, %v104
    %v106 = vpop.f32.mrf.mxu0
    %107 = vdwg.mxu0
    %108 = vmatpush.bf16.msra.mxu0 0
    %109 = vmatpush.bf16.msra.mxu0 0
    %110 = vmatpush.bf16.msra.mxu0 0
    %111 = vmatpush.bf16.msra.mxu0 0
    %112 = vmatpush.bf16.msra.mxu0 0
    %113 = vmatpush.bf16.msra.mxu0 0
    %114 = vmatpush.bf16.msra.mxu0 %v68
    %115 = vmatpush.bf16.msra.mxu0 %v64
    %116 = vmatmul.bf16.gmra.mxu0 %v80
    %v117 = vpop.f32.mrf.mxu0
    %v118 = vadd.f32 %v32, %v117
    %v119 = vpop.f32.mrf.mxu0
    %120 = vdwg.mxu0
    %121 = vmatpush.bf16.msra.mxu0 0
    %122 = vmatpush.bf16.msra.mxu0 0
    %123 = vmatpush.bf16.msra.mxu0 0
    %124 = vmatpush.bf16.msra.mxu0 0
    %125 = vmatpush.bf16.msra.mxu0 0
    %126 = vmatpush.bf16.msra.mxu0 0
    %127 = vmatpush.bf16.msra.mxu0 %v69
    %128 = vmatpush.bf16.msra.mxu0 %v65
    %129 = vmatmul.bf16.gmra.mxu0 %v80
    %v130 = vpop.f32.mrf.mxu0
    %v131 = vadd.f32 %v33, %v130
    %v132 = vpop.f32.mrf.mxu0
    %133 = vdwg.mxu0
    %v134 = vmax.f32 %v92, -1.0
    %v135 = vmax.f32 %v105, -1.0
    %v136 = vmax.f32 %v118, -1.0
    %v137 = vmax.f32 %v131, -1.0
    %v138 = vmin.f32 %v134, 1.0
    %v139 = vmin.f32 %v135, 1.0
    %v140 = vmin.f32 %v136, 1.0
    %v141 = vmin.f32 %v137, 1.0
    %v142 = vand.u32 2147483647, %v138
    %v143 = vand.u32 2147483647, %v139
    %v144 = vand.u32 2147483647, %v140
    %v145 = vand.u32 2147483647, %v141
    %v146 = vsub.f32 2.0, %v142
    %v147 = vsub.f32 2.0, %v143
    %v148 = vsub.f32 2.0, %v144
    %v149 = vsub.f32 2.0, %v145
    %v150 = vmul.f32 %v138, %v146
    %v151 = vmul.f32 %v139, %v147
    %v152 = vmul.f32 %v140, %v148
    %v153 = vmul.f32 %v141, %v149
    %v154 = vpack.c.bf16 %v150, %v150
    %v155 = vpack.c.bf16 %v151, %v151
    %v156 = vpack.c.bf16 %v152, %v152
    %v157 = vpack.c.bf16 %v153, %v153
    %v158 = vld [vmem:[%s3] sm:$0xf]
    %v159 = vld [vmem:[%s3 + $0x4] sm:$0xf]
    %v160 = vld [vmem:[%s3 + $0x8] sm:$0xf]
    %v161 = vld [vmem:[%s3 + $0xc] sm:$0xf]
    %v162 = vld [vmem:[%s3 + $0x10] sm:$0xf]
    %v163 = vld [vmem:[%s3 + $0x14] sm:$0xf]
    %v164 = vld [vmem:[%s3 + $0x18] sm:$0xf]
    %v165 = vld [vmem:[%s3 + $0x1c] sm:$0xf]
    %v166 = vld [vmem:[%s3 + $0x20] sm:$0xf]
    %v167 = vld [vmem:[%s3 + $0x24] sm:$0xf]
    %v168 = vld [vmem:[%s3 + $0x28] sm:$0xf]
    %v169 = vld [vmem:[%s3 + $0x2c] sm:$0xf]
    %v170 = vld [vmem:[%s3 + $0x30] sm:$0xf]
    %v171 = vld [vmem:[%s3 + $0x34] sm:$0xf]
    %v172 = vld [vmem:[%s3 + $0x38] sm:$0xf]
    %v173 = vld [vmem:[%s3 + $0x3c] sm:$0xf]
    %v174 = vld [vmem:[%s3 + $0x40] sm:$0xf]
    %v175 = vld [vmem:[%s3 + $0x44] sm:$0xf]
    %v176 = vld [vmem:[%s3 + $0x48] sm:$0xf]
    %v177 = vld [vmem:[%s3 + $0x4c] sm:$0xf]
    %v178 = vld [vmem:[%s3 + $0x50] sm:$0xf]
    %v179 = vld [vmem:[%s3 + $0x54] sm:$0xf]
    %v180 = vld [vmem:[%s3 + $0x58] sm:$0xf]
    %v181 = vld [vmem:[%s3 + $0x5c] sm:$0xf]
    %v182 = vld [vmem:[%s3 + $0x60] sm:$0xf]
    %v183 = vld [vmem:[%s3 + $0x64] sm:$0xf]
    %v184 = vld [vmem:[%s3 + $0x68] sm:$0xf]
    %v185 = vld [vmem:[%s3 + $0x6c] sm:$0xf]
    %v186 = vld [vmem:[%s3 + $0x70] sm:$0xf]
    %v187 = vld [vmem:[%s3 + $0x74] sm:$0xf]
    %v188 = vld [vmem:[%s3 + $0x78] sm:$0xf]
    %v189 = vld [vmem:[%s3 + $0x7c] sm:$0xf]
    %v190 = vld [vmem:[%s3 + $0x80] sm:$0xf]
    %v191 = vld [vmem:[%s3 + $0x84] sm:$0xf]
    %v192 = vld [vmem:[%s3 + $0x88] sm:$0xf]
    %v193 = vld [vmem:[%s3 + $0x8c] sm:$0xf]
    %v194 = vld [vmem:[%s3 + $0x90] sm:$0xf]
    %v195 = vld [vmem:[%s3 + $0x94] sm:$0xf]
    %v196 = vld [vmem:[%s3 + $0x98] sm:$0xf]
    %v197 = vld [vmem:[%s3 + $0x9c] sm:$0xf]
    %v198 = vld [vmem:[%s3 + $0xa0] sm:$0xf]
    %v199 = vld [vmem:[%s3 + $0xa4] sm:$0xf]
    %v200 = vld [vmem:[%s3 + $0xa8] sm:$0xf]
    %v201 = vld [vmem:[%s3 + $0xac] sm:$0xf]
    %v202 = vld [vmem:[%s3 + $0xb0] sm:$0xf]
    %v203 = vld [vmem:[%s3 + $0xb4] sm:$0xf]
    %v204 = vld [vmem:[%s3 + $0xb8] sm:$0xf]
    %v205 = vld [vmem:[%s3 + $0xbc] sm:$0xf]
    %v206 = vld [vmem:[%s3 + $0xc0] sm:$0xf]
    %v207 = vld [vmem:[%s3 + $0xc4] sm:$0xf]
    %v208 = vld [vmem:[%s3 + $0xc8] sm:$0xf]
    %v209 = vld [vmem:[%s3 + $0xcc] sm:$0xf]
    %v210 = vld [vmem:[%s3 + $0xd0] sm:$0xf]
    %v211 = vld [vmem:[%s3 + $0xd4] sm:$0xf]
    %v212 = vld [vmem:[%s3 + $0xd8] sm:$0xf]
    %v213 = vld [vmem:[%s3 + $0xdc] sm:$0xf]
    %v214 = vld [vmem:[%s3 + $0xe0] sm:$0xf]
    %v215 = vld [vmem:[%s3 + $0xe4] sm:$0xf]
    %v216 = vld [vmem:[%s3 + $0xe8] sm:$0xf]
    %v217 = vld [vmem:[%s3 + $0xec] sm:$0xf]
    %v218 = vld [vmem:[%s3 + $0xf0] sm:$0xf]
    %v219 = vld [vmem:[%s3 + $0xf4] sm:$0xf]
    %v220 = vld [vmem:[%s3 + $0xf8] sm:$0xf]
    %v221 = vld [vmem:[%s3 + $0xfc] sm:$0xf]
    %v286 = vunpack.c.l.b16 %v158
    %v287 = vunpack.c.l.b16 %v159
    %v288 = vunpack.c.l.b16 %v160
    %v289 = vunpack.c.l.b16 %v161
    %v290 = vunpack.c.l.b16 %v162
    %v291 = vunpack.c.l.b16 %v163
    %v292 = vunpack.c.l.b16 %v164
    %v293 = vunpack.c.l.b16 %v165
    %v294 = vunpack.c.l.b16 %v166
    %v295 = vunpack.c.l.b16 %v167
    %v296 = vunpack.c.l.b16 %v168
    %v297 = vunpack.c.l.b16 %v169
    %v298 = vunpack.c.l.b16 %v170
    %v299 = vunpack.c.l.b16 %v171
    %v300 = vunpack.c.l.b16 %v172
    %v301 = vunpack.c.l.b16 %v173
    %v302 = vunpack.c.l.b16 %v174
    %v303 = vunpack.c.l.b16 %v175
    %v304 = vunpack.c.l.b16 %v176
    %v305 = vunpack.c.l.b16 %v177
    %v306 = vunpack.c.l.b16 %v178
    %v307 = vunpack.c.l.b16 %v179
    %v308 = vunpack.c.l.b16 %v180
    %v309 = vunpack.c.l.b16 %v181
    %v310 = vunpack.c.l.b16 %v182
    %v311 = vunpack.c.l.b16 %v183
    %v312 = vunpack.c.l.b16 %v184
    %v313 = vunpack.c.l.b16 %v185
    %v314 = vunpack.c.l.b16 %v186
    %v315 = vunpack.c.l.b16 %v187
    %v316 = vunpack.c.l.b16 %v188
    %v317 = vunpack.c.l.b16 %v189
    %v318 = vunpack.c.l.b16 %v190
    %v319 = vunpack.c.l.b16 %v191
    %v320 = vunpack.c.l.b16 %v192
    %v321 = vunpack.c.l.b16 %v193
    %v322 = vunpack.c.l.b16 %v194
    %v323 = vunpack.c.l.b16 %v195
    %v324 = vunpack.c.l.b16 %v196
    %v325 = vunpack.c.l.b16 %v197
    %v326 = vunpack.c.l.b16 %v198
    %v327 = vunpack.c.l.b16 %v199
    %v328 = vunpack.c.l.b16 %v200
    %v329 = vunpack.c.l.b16 %v201
    %v330 = vunpack.c.l.b16 %v202
    %v331 = vunpack.c.l.b16 %v203
    %v332 = vunpack.c.l.b16 %v204
    %v333 = vunpack.c.l.b16 %v205
    %v334 = vunpack.c.l.b16 %v206
    %v335 = vunpack.c.l.b16 %v207
    %v336 = vunpack.c.l.b16 %v208
    %v337 = vunpack.c.l.b16 %v209
    %v338 = vunpack.c.l.b16 %v210
    %v339 = vunpack.c.l.b16 %v211
    %v340 = vunpack.c.l.b16 %v212
    %v341 = vunpack.c.l.b16 %v213
    %v342 = vunpack.c.l.b16 %v214
    %v343 = vunpack.c.l.b16 %v215
    %v344 = vunpack.c.l.b16 %v216
    %v345 = vunpack.c.l.b16 %v217
    %v346 = vunpack.c.l.b16 %v218
    %v347 = vunpack.c.l.b16 %v219
    %v348 = vunpack.c.l.b16 %v220
    %v349 = vunpack.c.l.b16 %v221
    %v350 = vpack.c.b16 %v287, %v286
    %v351 = vpack.c.b16 %v289, %v288
    %v352 = vpack.c.b16 %v291, %v290
    %v353 = vpack.c.b16 %v293, %v292
    %v354 = vpack.c.b16 %v295, %v294
    %v355 = vpack.c.b16 %v297, %v296
    %v356 = vpack.c.b16 %v299, %v298
    %v357 = vpack.c.b16 %v301, %v300
    %v358 = vpack.c.b16 %v303, %v302
    %v359 = vpack.c.b16 %v305, %v304
    %v360 = vpack.c.b16 %v307, %v306
    %v361 = vpack.c.b16 %v309, %v308
    %v362 = vpack.c.b16 %v311, %v310
    %v363 = vpack.c.b16 %v313, %v312
    %v364 = vpack.c.b16 %v315, %v314
    %v365 = vpack.c.b16 %v317, %v316
    %v366 = vpack.c.b16 %v319, %v318
    %v367 = vpack.c.b16 %v321, %v320
    %v368 = vpack.c.b16 %v323, %v322
    %v369 = vpack.c.b16 %v325, %v324
    %v370 = vpack.c.b16 %v327, %v326
    %v371 = vpack.c.b16 %v329, %v328
    %v372 = vpack.c.b16 %v331, %v330
    %v373 = vpack.c.b16 %v333, %v332
    %v374 = vpack.c.b16 %v335, %v334
    %v375 = vpack.c.b16 %v337, %v336
    %v376 = vpack.c.b16 %v339, %v338
    %v377 = vpack.c.b16 %v341, %v340
    %v378 = vpack.c.b16 %v343, %v342
    %v379 = vpack.c.b16 %v345, %v344
    %v380 = vpack.c.b16 %v347, %v346
    %v381 = vpack.c.b16 %v349, %v348
    %414 = vmatpush.bf16.msra.mxu0 %v357
    %415 = vmatpush.bf16.msra.mxu0 %v356
    %416 = vmatpush.bf16.msra.mxu0 %v355
    %417 = vmatpush.bf16.msra.mxu0 %v354
    %418 = vmatpush.bf16.msra.mxu0 %v353
    %419 = vmatpush.bf16.msra.mxu0 %v352
    %420 = vmatpush.bf16.msra.mxu0 %v351
    %421 = vmatpush.bf16.msra.mxu0 %v350
    %422 = vmatmul.bf16.gmra.mxu0 %v154
    %v423 = vpop.f32.mrf.mxu0
    %v424 = vadd.f32 0.0, %v423
    %v425 = vpop.f32.mrf.mxu0
    %426 = vdwg.mxu0
    %427 = vmatpush.bf16.msra.mxu0 %v365
    %428 = vmatpush.bf16.msra.mxu0 %v364
    %429 = vmatpush.bf16.msra.mxu0 %v363
    %430 = vmatpush.bf16.msra.mxu0 %v362
    %431 = vmatpush.bf16.msra.mxu0 %v361
    %432 = vmatpush.bf16.msra.mxu0 %v360
    %433 = vmatpush.bf16.msra.mxu0 %v359
    %434 = vmatpush.bf16.msra.mxu0 %v358
    %435 = vmatmul.bf16.gmra.mxu0 %v155
    %v436 = vpop.f32.mrf.mxu0
    %v437 = vadd.f32 %v424, %v436
    %v438 = vpop.f32.mrf.mxu0
    %439 = vdwg.mxu0
    %440 = vmatpush.bf16.msra.mxu0 %v373
    %441 = vmatpush.bf16.msra.mxu0 %v372
    %442 = vmatpush.bf16.msra.mxu0 %v371
    %443 = vmatpush.bf16.msra.mxu0 %v370
    %444 = vmatpush.bf16.msra.mxu0 %v369
    %445 = vmatpush.bf16.msra.mxu0 %v368
    %446 = vmatpush.bf16.msra.mxu0 %v367
    %447 = vmatpush.bf16.msra.mxu0 %v366
    %448 = vmatmul.bf16.gmra.mxu0 %v156
    %v449 = vpop.f32.mrf.mxu0
    %v450 = vadd.f32 %v437, %v449
    %v451 = vpop.f32.mrf.mxu0
    %452 = vdwg.mxu0
    %453 = vmatpush.bf16.msra.mxu0 %v381
    %454 = vmatpush.bf16.msra.mxu0 %v380
    %455 = vmatpush.bf16.msra.mxu0 %v379
    %456 = vmatpush.bf16.msra.mxu0 %v378
    %457 = vmatpush.bf16.msra.mxu0 %v377
    %458 = vmatpush.bf16.msra.mxu0 %v376
    %459 = vmatpush.bf16.msra.mxu0 %v375
    %460 = vmatpush.bf16.msra.mxu0 %v374
    %461 = vmatmul.bf16.gmra.mxu0 %v157
    %v462 = vpop.f32.mrf.mxu0
    %v463 = vadd.f32 %v450, %v462
    %v464 = vpop.f32.mrf.mxu0
    %465 = vdwg.mxu0
    %vm466 = vcmask 64512
    %467 = vst.msk [vmem:[#allocation2] sm:$0xff] %vm466, %v463
    // Predicated region
    $region18: #{binary_model_forward.1} parent=1 // pred_check
      _
    $region19: #{binary_model_forward.1} parent=1 // pred_check_branch
      %469 = sbr.rel (0) target = $region21
    $region20: #{binary_model_forward.1} parent=1 // pred_region
      %471 = vsyncadd [#allocation3], 0
      %s473 = sshll.u32 [#allocation2], 4
      %s474 = int_to_ptr.vmem [resolvable:$true] %s473
      %s475 = sshll.u32 %s4, 4
      %s476 = int_to_ptr.hbm [resolvable:$true] %s475
      %478 = dma.vmem_to_hbm [thread:$0]  %s474, 128, %s476, [#allocation3]
    $region21: #{binary_model_forward.1} parent=1 // pred_fallthru
      _
    // Predicated region
    $region22: #{binary_model_forward.1} parent=1 // pred_check
      _
    $region23: #{binary_model_forward.1} parent=1 // pred_check_branch
      %480 = sbr.rel (0) target = $region25
    $region24: #{binary_model_forward.1} parent=1 // pred_region
      %482 = dma.done [#allocation3], 128
    $region25: #{binary_model_forward.1} parent=1 // pred_fallthru
      _
    %483 = vsyncpa [#allocation3], 1

</llo_original>
